<compile_context>
chip_gen: v5e
topology: v5e:2x2
jax: 0.10.0
libtpu: 0.0.40
codegen_flags: <defaults>
</compile_context>

<pallas_src>
import math

import jax
import jax.numpy as jnp
from jax.experimental import pallas as pl
from jax.experimental.pallas import tpu as pltpu


# ---------------------------------------------------------------------------
# Kernels
# ---------------------------------------------------------------------------

def gcn_linear_kernel(x_ref, wt_ref, b_ref, h_ref):
    """h = x @ W^T + b for one row tile.  f32 compute, bf16 lane-dense output."""
    h = jnp.dot(x_ref[...], wt_ref[...], preferred_element_type=jnp.float32)
    h_ref[...] = (h + b_ref[...]).astype(h_ref.dtype)


def gcn_prop_kernel(alpha_ref, adj_ref, h_ref, o_ref):
    """out = PReLU(adj @ h), tiled over (row tiles, k tiles).

    alpha_ref: (1,) f32 in SMEM (scalar prefetch) -- shared PReLU parameter.
    adj_ref  : (TM, TK) bf16 adjacency tile, streamed from HBM.
    h_ref    : (N_pad_k, H_pad) bf16, fully VMEM-resident.
    o_ref    : (TM, H_pad) f32 output tile; its block index is constant along k,
               so it stays resident and doubles as the accumulator.
    """
    k = pl.program_id(1)
    nk = pl.num_programs(1)

    @pl.when(k == 0)
    def _init():
        o_ref[...] = jnp.zeros_like(o_ref)

    tk = adj_ref.shape[1]
    start = pl.multiple_of(k * tk, tk)
    h_blk = h_ref[pl.ds(start, tk), :]                     # (TK, H_pad) bf16
    o_ref[...] += jnp.dot(adj_ref[...], h_blk,
                          preferred_element_type=jnp.float32)

    @pl.when(k == nk - 1)
    def _epilogue():
        ah = o_ref[...]
        alpha = alpha_ref[0]
        o_ref[...] = jnp.where(ah > 0, ah, alpha * ah)


# ---------------------------------------------------------------------------
# Wrapper
# ---------------------------------------------------------------------------

def _round_up(v, m):
    return ((v + m - 1) // m) * m


def gcn_forward(x, adj, weight, bias, alpha, *, tm=256, tk=1024):
    """GCN forward.

    x: (1, N, F) f32, adj: (N, N) f32 (dense form of the sparse adjacency),
    weight: (H, F), bias: (H,), alpha: scalar PReLU parameter.
    Returns (1, N, H) f32.

    Tile guidance (the propagation is HBM-bound everywhere -- pick tiles so each
    streamed bf16 adj tile is >= ~0.5-1 MiB):
      v5e : tm=256-512, tk=1024
      v6e : tm=512,     tk=1024-2048
      v7x : tm=256-512, tk=1024  (keep gi >= 2 so both TensorCores get row tiles)
    TM stays a multiple of 8, TK a multiple of 128; both are capped by the padded
    problem size below so small graphs don't over-pad.
    """
    assert x.ndim == 3 and x.shape[0] == 1
    _, n, f = x.shape
    h_dim = weight.shape[0]

    # Per-axis padding: rows of adj / out -> multiple of tm; cols of adj
    # (= rows of h / x) -> multiple of tk; hidden dim lane-dense to 128.
    tm = max(8, min(_round_up(tm, 8), _round_up(n, 8)))
    tk = max(128, min(_round_up(tk, 128), _round_up(n, 128)))
    n_pad_m = _round_up(n, tm)
    n_pad_k = _round_up(n, tk)
    h_pad = _round_up(h_dim, 128)
    gi = n_pad_m // tm
    gk = n_pad_k // tk

    # --- host-side layout prep: touch adj once (cast bf16, then pad) ----------
    adj_bf = jnp.pad(adj.astype(jnp.bfloat16),
                     ((0, n_pad_m - n), (0, n_pad_k - n)))            # (Nm, Nk) bf16
    x2 = jnp.pad(x[0].astype(jnp.float32), ((0, n_pad_k - n), (0, 0)))  # (Nk, F)
    wt_p = jnp.pad(weight.T.astype(jnp.float32),
                   ((0, 0), (0, h_pad - h_dim)))                      # (F, H_pad)
    b_p = jnp.pad(bias.astype(jnp.float32), (0, h_pad - h_dim)).reshape(1, h_pad)
    alpha_arr = jnp.asarray(alpha, jnp.float32).reshape(1)

    # --- stage 1: h = x @ W^T + b (negligible FLOPs; one grid step / row tile) -
    # NOTE: padded rows of h equal the bias (0 @ W^T + b); harmless because the
    # corresponding padded *columns* of adj are zero -- keep that invariant.
    tl = math.gcd(n_pad_k, 512)            # multiple of 128, divides n_pad_k
    h_bf16 = pl.pallas_call(
        gcn_linear_kernel,
        out_shape=jax.ShapeDtypeStruct((n_pad_k, h_pad), jnp.bfloat16),
        grid_spec=pltpu.PrefetchScalarGridSpec(
            num_scalar_prefetch=0,
            grid=(n_pad_k // tl,),
            in_specs=[
                pl.BlockSpec((tl, f), lambda i: (i, 0)),          # x row tile
                pl.BlockSpec((f, h_pad), lambda i: (0, 0)),       # W^T (resident)
                pl.BlockSpec((1, h_pad), lambda i: (0, 0)),       # bias row
            ],
            out_specs=pl.BlockSpec((tl, h_pad), lambda i: (i, 0)),
        ),
        compiler_params=pltpu.CompilerParams(
            dimension_semantics=("parallel",)),
    )(x2, wt_p, b_p)

    # --- stage 2: out = PReLU(adj @ h) -----------------------------------------
    # Single-buffer the resident h once its double buffer would eat real VMEM
    # (only matters for large N / v7x; small demo shapes take the default path).
    h_bytes = n_pad_k * h_pad * 2
    h_bufs = 1 if 2 * h_bytes > (8 << 20) else 2
    h_pipeline_mode = pl.Buffered(1) if h_bufs == 1 else None

    vmem_need = (2 * tm * tk * 2          # adj tiles, double-buffered bf16
                 + h_bufs * h_bytes       # resident h
                 + 2 * tm * h_pad * 4)    # f32 output block (accumulator)
    vmem_limit = min(max(int(1.5 * vmem_need) + (2 << 20), 32 << 20), 128 << 20)

    out_pad = pl.pallas_call(
        gcn_prop_kernel,
        out_shape=jax.ShapeDtypeStruct((n_pad_m, h_pad), jnp.float32),
        grid_spec=pltpu.PrefetchScalarGridSpec(
            num_scalar_prefetch=1,        # alpha -> SMEM
            grid=(gi, gk),
            in_specs=[
                pl.BlockSpec((tm, tk), lambda i, k, alpha: (i, k)),        # adj tile
                pl.BlockSpec((n_pad_k, h_pad), lambda i, k, alpha: (0, 0),  # h resident
                             pipeline_mode=h_pipeline_mode),
            ],
            out_specs=pl.BlockSpec((tm, h_pad), lambda i, k, alpha: (i, 0)),
        ),
        compiler_params=pltpu.CompilerParams(
            dimension_semantics=("parallel", "arbitrary"),
            vmem_limit_bytes=vmem_limit),
        cost_estimate=pl.CostEstimate(
            flops=int(2 * n_pad_m * n_pad_k * h_pad),
            transcendentals=0,
            bytes_accessed=int(n_pad_m * n_pad_k * 2 + n_pad_k * h_pad * 2
                               + n_pad_m * h_pad * 4),
        ),
    )(alpha_arr, adj_bf, h_bf16)

    # Strip padding, restore the batch dim.
    return out_pad[:n, :h_dim][None]


# ---------------------------------------------------------------------------
# Parameter init matching the PyTorch module
# ---------------------------------------------------------------------------

def init_params(key, n_features, n_hidden):
    kw, kb = jax.random.split(key)
    # xavier_normal_ on fc.weight (shape (H, F)): std = sqrt(2 / (fan_in + fan_out))
    std = (2.0 / (n_features + n_hidden)) ** 0.5
    weight = std * jax.random.normal(kw, (n_hidden, n_features), jnp.float32)
    # fc.bias keeps PyTorch Linear default: U(-1/sqrt(fan_in), 1/sqrt(fan_in))
    bound = 1.0 / (n_features ** 0.5)
    bias = jax.random.uniform(kb, (n_hidden,), jnp.float32, -bound, bound)
    # PReLU single shared parameter, default init 0.25
    alpha = jnp.float32(0.25)
    return weight, bias, alpha


if __name__ == "__main__":
    key = jax.random.PRNGKey(0)
    k_x, k_adj, k_p = jax.random.split(key, 3)

    # N deliberately not a multiple of 128 to exercise the per-axis padding path.
    N, F, H = 200, 32, 32
    x = jax.random.normal(k_x, (1, N, F), jnp.float32)

    # Deterministic row-normalized "sparse" adjacency (dense-equivalent of spmm).
    raw = jax.random.uniform(k_adj, (N, N), jnp.float32)
    adj = (raw > 0.9).astype(jnp.float32) + jnp.eye(N, dtype=jnp.float32)
    adj = adj / jnp.sum(adj, axis=1, keepdims=True)

    weight, bias, alpha = init_params(k_p, F, H)

    out = gcn_forward(x, adj, weight, bias, alpha)
    out = jax.block_until_ready(out)

    # Plain-JAX f32 reference (PyTorch semantics).  The kernel streams adj/h in
    # bf16 with f32 accumulation, so compare with bf16-appropriate tolerance.
    h_ref = x[0] @ weight.T + bias
    ah_ref = adj @ h_ref
    ref = jnp.where(ah_ref > 0, ah_ref, alpha * ah_ref)[None]

    assert out.shape == (1, N, H)
    assert bool(jnp.allclose(out, ref, atol=3e-2, rtol=3e-2)), (
        float(jnp.max(jnp.abs(out - ref))))

    print("KERNEL_OK")
</pallas_src>

<mosaic_0001>
module attributes {stable_mosaic.version = 11 : i64} {
  func.func @gcn_linear_kernel(%arg0: i32, %arg1: memref<256x32xf32, #tpu.memory_space<vmem>>, %arg2: memref<32x128xf32, #tpu.memory_space<vmem>>, %arg3: memref<1x128xf32, #tpu.memory_space<vmem>>, %arg4: memref<256x128xbf16, #tpu.memory_space<vmem>>) attributes {dimension_semantics = [#tpu.dimension_semantics<parallel>], iteration_bounds = array<i64: 1>, scalar_prefetch = 0 : i64, scratch_operands = 0 : i64, tpu.core_type = #tpu.core_type<tc>, window_params = [{transform_indices = @transform_0, window_bounds = array<i64: 256, 32>}, {pipeline_mode = #tpu.pipeline_mode<synchronous>, transform_indices = @transform_1, window_bounds = array<i64: 32, 128>}, {pipeline_mode = #tpu.pipeline_mode<synchronous>, transform_indices = @transform_2, window_bounds = array<i64: 1, 128>}, {transform_indices = @transform_3, window_bounds = array<i64: 256, 128>}]} {
    %c0 = arith.constant 0 : index
    %c0_0 = arith.constant 0 : index
    %0 = vector.load %arg1[%c0, %c0_0] : memref<256x32xf32, #tpu.memory_space<vmem>>, vector<256x32xf32>
    %c0_1 = arith.constant 0 : index
    %c0_2 = arith.constant 0 : index
    %1 = vector.load %arg2[%c0_1, %c0_2] : memref<32x128xf32, #tpu.memory_space<vmem>>, vector<32x128xf32>
    %cst = arith.constant dense<0.000000e+00> : vector<256x128xf32>
    %2 = tpu.matmul %0, %1, %cst {dimension_numbers = #tpu.dot_dimension_numbers<[1], [0], [0], [1], [0, 0, 1, 1], [], []>} : vector<256x32xf32>, vector<32x128xf32>, vector<256x128xf32> -> vector<256x128xf32>
    %c0_3 = arith.constant 0 : index
    %c0_4 = arith.constant 0 : index
    %3 = vector.load %arg3[%c0_3, %c0_4] : memref<1x128xf32, #tpu.memory_space<vmem>>, vector<1x128xf32>
    %4 = vector.broadcast %3 : vector<1x128xf32> to vector<256x128xf32>
    %5 = arith.addf %2, %4 : vector<256x128xf32>
    %6 = arith.truncf %5 : vector<256x128xf32> to vector<256x128xbf16>
    %c0_5 = arith.constant 0 : index
    %c0_6 = arith.constant 0 : index
    %7 = vector.load %arg4[%c0_5, %c0_6] : memref<256x128xbf16, #tpu.memory_space<vmem>>, vector<256x128xbf16>
    tpu.vector_store %arg4[%c0_5, %c0_6], %6 {strides = array<i32>} : memref<256x128xbf16, #tpu.memory_space<vmem>>, vector<256x128xbf16>,
    return
  }
  func.func @transform_0(%arg0: i32) -> (i32, i32) {
    %c0_i32 = arith.constant 0 : i32
    %c0_i32_0 = arith.constant 0 : i32
    return %arg0, %c0_i32 : i32, i32
  }
  func.func @transform_1(%arg0: i32) -> (i32, i32) {
    %c0_i32 = arith.constant 0 : i32
    %c0_i32_0 = arith.constant 0 : i32
    %c0_i32_1 = arith.constant 0 : i32
    return %c0_i32, %c0_i32_0 : i32, i32
  }
  func.func @transform_2(%arg0: i32) -> (i32, i32) {
    %c0_i32 = arith.constant 0 : i32
    %c0_i32_0 = arith.constant 0 : i32
    %c0_i32_1 = arith.constant 0 : i32
    return %c0_i32, %c0_i32_0 : i32, i32
  }
  func.func @transform_3(%arg0: i32) -> (i32, i32) {
    %c0_i32 = arith.constant 0 : i32
    %c0_i32_0 = arith.constant 0 : i32
    return %arg0, %c0_i32 : i32, i32
  }
}

</mosaic_0001>

<llo_original>
// kernel: tpu_custom_call.1
$region0: #{tpu_custom_call.1}
  #allocation0 [shape = 'u32[]', space=smem, size = 0x4, offset = 0x4, fixed_abs, tag = 'smem constant byte address 0x4 - core index']
  #allocation1 [shape = 'u32[72,128]{1,0:T(1,128)}', space=vmem, size = 0x9000, scoped, tag = 'internal scratch']
  %s0 = inlined_call_operand.vmem [shape: f32[256,32], index: 0, kind: input, shape index: {}]
  %s1 = inlined_call_operand.vmem [shape: f32[32,128], index: 1, kind: input, shape index: {}]
  %s2 = inlined_call_operand.vmem [shape: f32[1,128], index: 2, kind: input, shape index: {}]
  %s3 = inlined_call_operand.hbm [shape: bf16[256,128], index: 3, kind: output, shape index: {}]
  %s4 = sld [smem:[#allocation0]]
  $region22: #{tpu_custom_call.1} parent=0
    _
  %s6 = ssub.s32 1, %s4
  %s7 = scalar_select 0, %s6, %s4
  $region1: #{tpu_custom_call.1} parent=0
    #allocation2 [shape = 'u8[65536]{0}', space=vmem, size = 0x10000, scoped, tag = 'output window, operand 0, single buffered']
    #allocation3 [shape = 's32[1]{0}', space=sflag, size = 0x4, scoped, tag = 'scoped memory for tpu_custom_call.1']
    %8 = vsyncpa [#allocation3], 0
    // Predicated region
    $region2: #{tpu_custom_call.1} parent=1 // pred_check
      _
    $region3: #{tpu_custom_call.1} parent=1 // pred_check_branch
      %10 = sbr.rel (0) target = $region5
    $region4: #{tpu_custom_call.1} parent=1 // pred_region
      _
    $region5: #{tpu_custom_call.1} parent=1 // pred_fallthru
      _
    // Predicated region
    $region6: #{tpu_custom_call.1} parent=1 // pred_check
      _
    $region7: #{tpu_custom_call.1} parent=1 // pred_check_branch
      %12 = sbr.rel (0) target = $region9
    $region8: #{tpu_custom_call.1} parent=1 // pred_region
      _
    $region9: #{tpu_custom_call.1} parent=1 // pred_fallthru
      _
    // Predicated region
    $region10: #{tpu_custom_call.1} parent=1 // pred_check
      _
    $region11: #{tpu_custom_call.1} parent=1 // pred_check_branch
      %14 = sbr.rel (0) target = $region13
    $region12: #{tpu_custom_call.1} parent=1 // pred_region
      _
    $region13: #{tpu_custom_call.1} parent=1 // pred_fallthru
      _
    %v15 = vld [vmem:[%s0] sm:$0xff]
    %v16 = vld [vmem:[%s0 + $0x8] sm:$0xff]
    %v17 = vld [vmem:[%s0 + $0x10] sm:$0xff]
    %v18 = vld [vmem:[%s0 + $0x18] sm:$0xff]
    %v19 = vld [vmem:[%s0 + $0x20] sm:$0xff]
    %v20 = vld [vmem:[%s0 + $0x28] sm:$0xff]
    %v21 = vld [vmem:[%s0 + $0x30] sm:$0xff]
    %v22 = vld [vmem:[%s0 + $0x38] sm:$0xff]
    %v23 = vld [vmem:[%s0 + $0x40] sm:$0xff]
    %v24 = vld [vmem:[%s0 + $0x48] sm:$0xff]
    %v25 = vld [vmem:[%s0 + $0x50] sm:$0xff]
    %v26 = vld [vmem:[%s0 + $0x58] sm:$0xff]
    %v27 = vld [vmem:[%s0 + $0x60] sm:$0xff]
    %v28 = vld [vmem:[%s0 + $0x68] sm:$0xff]
    %v29 = vld [vmem:[%s0 + $0x70] sm:$0xff]
    %v30 = vld [vmem:[%s0 + $0x78] sm:$0xff]
    %v31 = vld [vmem:[%s0 + $0x80] sm:$0xff]
    %v32 = vld [vmem:[%s0 + $0x88] sm:$0xff]
    %v33 = vld [vmem:[%s0 + $0x90] sm:$0xff]
    %v34 = vld [vmem:[%s0 + $0x98] sm:$0xff]
    %v35 = vld [vmem:[%s0 + $0xa0] sm:$0xff]
    %v36 = vld [vmem:[%s0 + $0xa8] sm:$0xff]
    %v37 = vld [vmem:[%s0 + $0xb0] sm:$0xff]
    %v38 = vld [vmem:[%s0 + $0xb8] sm:$0xff]
    %v39 = vld [vmem:[%s0 + $0xc0] sm:$0xff]
    %v40 = vld [vmem:[%s0 + $0xc8] sm:$0xff]
    %v41 = vld [vmem:[%s0 + $0xd0] sm:$0xff]
    %v42 = vld [vmem:[%s0 + $0xd8] sm:$0xff]
    %v43 = vld [vmem:[%s0 + $0xe0] sm:$0xff]
    %v44 = vld [vmem:[%s0 + $0xe8] sm:$0xff]
    %v45 = vld [vmem:[%s0 + $0xf0] sm:$0xff]
    %v46 = vld [vmem:[%s0 + $0xf8] sm:$0xff]
    %v47 = vld [vmem:[%s1] sm:$0xff]
    %v48 = vld [vmem:[%s1 + $0x8] sm:$0xff]
    %v49 = vld [vmem:[%s1 + $0x10] sm:$0xff]
    %v50 = vld [vmem:[%s1 + $0x18] sm:$0xff]
    %v51 = vld [vmem:[%s2] sm:$0x1]
    %v53 = vperm.slane %v51, 0
    %vm55 = vcmask 261120
    %v57 = vsel %vm55, %v15, 0
    %v60 = vsel %vm55, %v16, 0
    %v63 = vsel %vm55, %v17, 0
    %v66 = vsel %vm55, %v18, 0
    %v69 = vsel %vm55, %v19, 0
    %v72 = vsel %vm55, %v20, 0
    %v75 = vsel %vm55, %v21, 0
    %v78 = vsel %vm55, %v22, 0
    %v81 = vsel %vm55, %v23, 0
    %v84 = vsel %vm55, %v24, 0
    %v87 = vsel %vm55, %v25, 0
    %v90 = vsel %vm55, %v26, 0
    %v93 = vsel %vm55, %v27, 0
    %v96 = vsel %vm55, %v28, 0
    %v99 = vsel %vm55, %v29, 0
    %v102 = vsel %vm55, %v30, 0
    %v105 = vsel %vm55, %v31, 0
    %v108 = vsel %vm55, %v32, 0
    %v111 = vsel %vm55, %v33, 0
    %v114 = vsel %vm55, %v34, 0
    %v117 = vsel %vm55, %v35, 0
    %v120 = vsel %vm55, %v36, 0
    %v123 = vsel %vm55, %v37, 0
    %v126 = vsel %vm55, %v38, 0
    %v129 = vsel %vm55, %v39, 0
    %v132 = vsel %vm55, %v40, 0
    %v135 = vsel %vm55, %v41, 0
    %v138 = vsel %vm55, %v42, 0
    %v141 = vsel %vm55, %v43, 0
    %v144 = vsel %vm55, %v44, 0
    %v147 = vsel %vm55, %v45, 0
    %v150 = vsel %vm55, %v46, 0
    %152 = vmatpush.msra.mxu0 0.0
    %153 = vmatpush.msra.mxu0 0.0
    %154 = vmatpush.msra.mxu0 0.0
    %155 = vmatpush.msra.mxu0 0.0
    %156 = vmatpush.msra.mxu0 0.0
    %157 = vmatpush.msra.mxu0 0.0
    %158 = vmatpush.msra.mxu0 0.0
    %159 = vmatpush.msra.mxu0 0.0
    %160 = vmatpush.msra.mxu0 0.0
    %161 = vmatpush.msra.mxu0 0.0
    %162 = vmatpush.msra.mxu0 0.0
    %163 = vmatpush.msra.mxu0 0.0
    %164 = vmatpush.msra.mxu0 %v50
    %165 = vmatpush.msra.mxu0 %v49
    %166 = vmatpush.msra.mxu0 %v48
    %167 = vmatpush.msra.mxu0 %v47
    %168 = vmatmul.f32.gmra.mxu0 %v57
    %v169 = vpop.f32.mrf.mxu0
    %v170 = vadd.f32 %v53, %v169
    %171 = vmatmul.f32.gmra.mxu0 %v60
    %v172 = vpop.f32.mrf.mxu0
    %v173 = vadd.f32 %v53, %v172
    %174 = vmatmul.f32.gmra.mxu0 %v63
    %v175 = vpop.f32.mrf.mxu0
    %v176 = vadd.f32 %v53, %v175
    %177 = vmatmul.f32.gmra.mxu0 %v66
    %v178 = vpop.f32.mrf.mxu0
    %v179 = vadd.f32 %v53, %v178
    %180 = vmatmul.f32.gmra.mxu0 %v69
    %v181 = vpop.f32.mrf.mxu0
    %v182 = vadd.f32 %v53, %v181
    %183 = vmatmul.f32.gmra.mxu0 %v72
    %v184 = vpop.f32.mrf.mxu0
    %v185 = vadd.f32 %v53, %v184
    %186 = vmatmul.f32.gmra.mxu0 %v75
    %v187 = vpop.f32.mrf.mxu0
    %v188 = vadd.f32 %v53, %v187
    %189 = vmatmul.f32.gmra.mxu0 %v78
    %v190 = vpop.f32.mrf.mxu0
    %v191 = vadd.f32 %v53, %v190
    %192 = vmatmul.f32.gmra.mxu0 %v81
    %v193 = vpop.f32.mrf.mxu0
    %v194 = vadd.f32 %v53, %v193
    %195 = vmatmul.f32.gmra.mxu0 %v84
    %v196 = vpop.f32.mrf.mxu0
    %v197 = vadd.f32 %v53, %v196
    %198 = vmatmul.f32.gmra.mxu0 %v87
    %v199 = vpop.f32.mrf.mxu0
    %v200 = vadd.f32 %v53, %v199
    %201 = vmatmul.f32.gmra.mxu0 %v90
    %v202 = vpop.f32.mrf.mxu0
    %v203 = vadd.f32 %v53, %v202
    %204 = vmatmul.f32.gmra.mxu0 %v93
    %v205 = vpop.f32.mrf.mxu0
    %v206 = vadd.f32 %v53, %v205
    %207 = vmatmul.f32.gmra.mxu0 %v96
    %v208 = vpop.f32.mrf.mxu0
    %v209 = vadd.f32 %v53, %v208
    %210 = vmatmul.f32.gmra.mxu0 %v99
    %v211 = vpop.f32.mrf.mxu0
    %v212 = vadd.f32 %v53, %v211
    %213 = vmatmul.f32.gmra.mxu0 %v102
    %v214 = vpop.f32.mrf.mxu0
    %v215 = vadd.f32 %v53, %v214
    %216 = vmatmul.f32.gmra.mxu0 %v105
    %v217 = vpop.f32.mrf.mxu0
    %v218 = vadd.f32 %v53, %v217
    %219 = vmatmul.f32.gmra.mxu0 %v108
    %v220 = vpop.f32.mrf.mxu0
    %v221 = vadd.f32 %v53, %v220
    %222 = vmatmul.f32.gmra.mxu0 %v111
    %v223 = vpop.f32.mrf.mxu0
    %v224 = vadd.f32 %v53, %v223
    %225 = vmatmul.f32.gmra.mxu0 %v114
    %v226 = vpop.f32.mrf.mxu0
    %v227 = vadd.f32 %v53, %v226
    %228 = vmatmul.f32.gmra.mxu0 %v117
    %v229 = vpop.f32.mrf.mxu0
    %v230 = vadd.f32 %v53, %v229
    %231 = vmatmul.f32.gmra.mxu0 %v120
    %v232 = vpop.f32.mrf.mxu0
    %v233 = vadd.f32 %v53, %v232
    %234 = vmatmul.f32.gmra.mxu0 %v123
    %v235 = vpop.f32.mrf.mxu0
    %v236 = vadd.f32 %v53, %v235
    %237 = vmatmul.f32.gmra.mxu0 %v126
    %v238 = vpop.f32.mrf.mxu0
    %v239 = vadd.f32 %v53, %v238
    %240 = vmatmul.f32.gmra.mxu0 %v129
    %v241 = vpop.f32.mrf.mxu0
    %v242 = vadd.f32 %v53, %v241
    %243 = vmatmul.f32.gmra.mxu0 %v132
    %v244 = vpop.f32.mrf.mxu0
    %v245 = vadd.f32 %v53, %v244
    %246 = vmatmul.f32.gmra.mxu0 %v135
    %v247 = vpop.f32.mrf.mxu0
    %v248 = vadd.f32 %v53, %v247
    %249 = vmatmul.f32.gmra.mxu0 %v138
    %v250 = vpop.f32.mrf.mxu0
    %v251 = vadd.f32 %v53, %v250
    %252 = vmatmul.f32.gmra.mxu0 %v141
    %v253 = vpop.f32.mrf.mxu0
    %v254 = vadd.f32 %v53, %v253
    %255 = vmatmul.f32.gmra.mxu0 %v144
    %v256 = vpop.f32.mrf.mxu0
    %v257 = vadd.f32 %v53, %v256
    %258 = vmatmul.f32.gmra.mxu0 %v147
    %v259 = vpop.f32.mrf.mxu0
    %v260 = vadd.f32 %v53, %v259
    %261 = vmatmul.f32.gmra.mxu0 %v150
    %v262 = vpop.f32.mrf.mxu0
    %v263 = vadd.f32 %v53, %v262
    %264 = vdwg.mxu0
    %v265 = vpack.c.bf16 %v170, %v170
    %v266 = vpack.c.bf16 %v173, %v173
    %v267 = vpack.c.bf16 %v176, %v176
    %v268 = vpack.c.bf16 %v179, %v179
    %v269 = vpack.c.bf16 %v182, %v182
    %v270 = vpack.c.bf16 %v185, %v185
    %v271 = vpack.c.bf16 %v188, %v188
    %v272 = vpack.c.bf16 %v191, %v191
    %v273 = vpack.c.bf16 %v194, %v194
    %v274 = vpack.c.bf16 %v197, %v197
    %v275 = vpack.c.bf16 %v200, %v200
    %v276 = vpack.c.bf16 %v203, %v203
    %v277 = vpack.c.bf16 %v206, %v206
    %v278 = vpack.c.bf16 %v209, %v209
    %v279 = vpack.c.bf16 %v212, %v212
    %v280 = vpack.c.bf16 %v215, %v215
    %v281 = vpack.c.bf16 %v218, %v218
    %v282 = vpack.c.bf16 %v221, %v221
    %v283 = vpack.c.bf16 %v224, %v224
    %v284 = vpack.c.bf16 %v227, %v227
    %v285 = vpack.c.bf16 %v230, %v230
    %v286 = vpack.c.bf16 %v233, %v233
    %v287 = vpack.c.bf16 %v236, %v236
    %v288 = vpack.c.bf16 %v239, %v239
    %v289 = vpack.c.bf16 %v242, %v242
    %v290 = vpack.c.bf16 %v245, %v245
    %v291 = vpack.c.bf16 %v248, %v248
    %v292 = vpack.c.bf16 %v251, %v251
    %v293 = vpack.c.bf16 %v254, %v254
    %v294 = vpack.c.bf16 %v257, %v257
    %v295 = vpack.c.bf16 %v260, %v260
    %v296 = vpack.c.bf16 %v263, %v263
    %297 = vst [vmem:[#allocation2] sm:$0xf] %v265
    %298 = vst [vmem:[#allocation2 + $0x4] sm:$0xf] %v266
    %299 = vst [vmem:[#allocation2 + $0x8] sm:$0xf] %v267
    %300 = vst [vmem:[#allocation2 + $0xc] sm:$0xf] %v268
    %301 = vst [vmem:[#allocation2 + $0x10] sm:$0xf] %v269
    %302 = vst [vmem:[#allocation2 + $0x14] sm:$0xf] %v270
    %303 = vst [vmem:[#allocation2 + $0x18] sm:$0xf] %v271
    %304 = vst [vmem:[#allocation2 + $0x1c] sm:$0xf] %v272
    %305 = vst [vmem:[#allocation2 + $0x20] sm:$0xf] %v273
    %306 = vst [vmem:[#allocation2 + $0x24] sm:$0xf] %v274
    %307 = vst [vmem:[#allocation2 + $0x28] sm:$0xf] %v275
    %308 = vst [vmem:[#allocation2 + $0x2c] sm:$0xf] %v276
    %309 = vst [vmem:[#allocation2 + $0x30] sm:$0xf] %v277
    %310 = vst [vmem:[#allocation2 + $0x34] sm:$0xf] %v278
    %311 = vst [vmem:[#allocation2 + $0x38] sm:$0xf] %v279
    %312 = vst [vmem:[#allocation2 + $0x3c] sm:$0xf] %v280
    %313 = vst [vmem:[#allocation2 + $0x40] sm:$0xf] %v281
    %314 = vst [vmem:[#allocation2 + $0x44] sm:$0xf] %v282
    %315 = vst [vmem:[#allocation2 + $0x48] sm:$0xf] %v283
    %316 = vst [vmem:[#allocation2 + $0x4c] sm:$0xf] %v284
    %317 = vst [vmem:[#allocation2 + $0x50] sm:$0xf] %v285
    %318 = vst [vmem:[#allocation2 + $0x54] sm:$0xf] %v286
    %319 = vst [vmem:[#allocation2 + $0x58] sm:$0xf] %v287
    %320 = vst [vmem:[#allocation2 + $0x5c] sm:$0xf] %v288
    %321 = vst [vmem:[#allocation2 + $0x60] sm:$0xf] %v289
    %322 = vst [vmem:[#allocation2 + $0x64] sm:$0xf] %v290
    %323 = vst [vmem:[#allocation2 + $0x68] sm:$0xf] %v291
    %324 = vst [vmem:[#allocation2 + $0x6c] sm:$0xf] %v292
    %325 = vst [vmem:[#allocation2 + $0x70] sm:$0xf] %v293
    %326 = vst [vmem:[#allocation2 + $0x74] sm:$0xf] %v294
    %327 = vst [vmem:[#allocation2 + $0x78] sm:$0xf] %v295
    %328 = vst [vmem:[#allocation2 + $0x7c] sm:$0xf] %v296
    // Predicated region
    $region14: #{tpu_custom_call.1} parent=1 // pred_check
      _
    $region15: #{tpu_custom_call.1} parent=1 // pred_check_branch
      %330 = sbr.rel (0) target = $region17
    $region16: #{tpu_custom_call.1} parent=1 // pred_region
      %332 = vsyncadd [#allocation3], 0
      %s333 = sshll.u32 [#allocation2], 4
      %s334 = int_to_ptr.vmem [resolvable:$true] %s333
      %s335 = sshll.u32 %s3, 4
      %s336 = int_to_ptr.hbm [resolvable:$true] %s335
      %341 = dma.vmem_to_hbm [thread:$0]  %s334, 2048, %s336, [#allocation3], 64, 64, 4
    $region17: #{tpu_custom_call.1} parent=1 // pred_fallthru
      _
    // Predicated region
    $region18: #{tpu_custom_call.1} parent=1 // pred_check
      _
    $region19: #{tpu_custom_call.1} parent=1 // pred_check_branch
      %343 = sbr.rel (0) target = $region21
    $region20: #{tpu_custom_call.1} parent=1 // pred_region
      %345 = dma.done [#allocation3], 2048
    $region21: #{tpu_custom_call.1} parent=1 // pred_fallthru
      _
    %346 = vsyncpa [#allocation3], 1

</llo_original>
